<compile_context>
chip_gen: v5e
topology: v5e:2x2
jax: 0.10.0
libtpu: 0.0.40
codegen_flags: <defaults>
</compile_context>

<pallas_src>
import jax
import jax.numpy as jnp
import numpy as np
from jax import lax
from jax.experimental import pallas as pl
from jax.experimental.pallas import tpu as pltpu

K = 3               # kernel_size=3, stride=1, pad=1
LEAKY_SLOPE = 0.01  # InPlaceABN default activation: leaky_relu(0.01)
EPS = 1e-5


def conv_bn_lrelu_kernel(x_ref, w_ref, shift_ref, o_ref):
    # x_ref:     (D+2, H+2, (W+2)*C_in)   padded, channel-folded slab for batch n
    # w_ref:     (K*K, (W+2)*C_in, W*C_out) banded weights (BN scale folded in)
    # shift_ref: (1, W*C_out)             BN shift tiled along W on the lane axis
    # o_ref:     (H, W*C_out)             one output depth slice, lane-dense
    d = pl.program_id(1)
    H = o_ref.shape[0]

    acc = jnp.zeros(o_ref.shape, dtype=jnp.float32)   # (H, 128): 2 vregs, no spill
    for kd in range(K):
        xs = x_ref[d + kd]                             # (H+2, (W+2)*C_in)
        for kh in range(K):
            patch = xs[kh:kh + H, :]                   # (H, (W+2)*C_in)
            acc += jnp.dot(patch, w_ref[kd * K + kh],
                           preferred_element_type=jnp.float32)

    y = acc + shift_ref[0, :]
    y = jnp.where(y >= 0, y, LEAKY_SLOPE * y)          # leaky_relu(0.01)
    o_ref[...] = y.astype(o_ref.dtype)


def _banded_weight(weight, scale, W):
    """PyTorch (C_out, C_in, kD, kH, kW) weights -> (K*K, (W+2)*C_in, W*C_out)
    banded-along-W weight matrix with the BN scale folded into output channels."""
    C_out, C_in = weight.shape[0], weight.shape[1]
    w_scaled = weight.astype(jnp.float32) * scale.reshape(C_out, 1, 1, 1, 1)
    # (C_out, C_in, kd, kh, kw) -> (kd, kh, kw, C_in, C_out)
    wt = jnp.transpose(w_scaled, (2, 3, 4, 1, 0))
    # band[kw, j, w] = 1 iff j == w + kw   (static, built in numpy)
    band = np.zeros((K, W + 2, W), np.float32)
    for kw in range(K):
        band[kw, np.arange(W) + kw, np.arange(W)] = 1.0
    band = jnp.asarray(band)
    # Wband[kd, kh, j, ci, w, co] = wt[kd, kh, j - w, ci, co] when 0 <= j-w < K
    wband = jnp.einsum('qjw,abqio->abjiwo', band, wt)
    return wband.reshape(K * K, (W + 2) * C_in, W * C_out)


def conv_bn_relu_3d(x_ncdhw, weight, gamma, beta, running_mean, running_var,
                    eps=EPS):
    """x_ncdhw: (N, C_in, D, H, W); weight: (C_out, C_in, K, K, K) (PyTorch order)."""
    N, C_in, D, H, W = x_ncdhw.shape
    C_out = weight.shape[0]

    # TODO(synk): PyTorch ConvBnReLU3D/InPlaceABN defaults to training-mode BN
    # (batch statistics); here BN is applied in inference form (running stats +
    # affine params), fused into the conv weights / a shift vector.
    inv_std = 1.0 / jnp.sqrt(running_var.astype(jnp.float32) + eps)
    scale = gamma.astype(jnp.float32) * inv_std                       # (C_out,)
    shift = beta.astype(jnp.float32) - running_mean.astype(jnp.float32) * scale

    # Input: NCDHW -> NDHWC, pad=1 on spatial dims, fold (W+2, C_in) into lanes.
    x = jnp.transpose(x_ncdhw, (0, 2, 3, 4, 1)).astype(jnp.float32)
    xp = jnp.pad(x, ((0, 0), (1, 1), (1, 1), (1, 1), (0, 0)))
    xp = xp.reshape(N, D + 2, H + 2, (W + 2) * C_in)

    # Banded weights with BN scale folded in: (K*K, (W+2)*C_in, W*C_out).
    wband = _banded_weight(weight, scale, W)

    # BN shift tiled along W so it matches the (w, c_out) lane packing.
    shift_lanes = jnp.tile(shift, (W,)).reshape(1, W * C_out)

    cost = pl.CostEstimate(
        flops=2 * N * D * H * W * (K ** 3) * C_in * C_out,
        transcendentals=0,
        bytes_accessed=int(xp.size * 4 + wband.size * 4
                           + N * D * H * W * C_out * 4),
    )

    out = pl.pallas_call(
        conv_bn_lrelu_kernel,
        out_shape=jax.ShapeDtypeStruct((N, D, H, W * C_out), jnp.float32),
        grid_spec=pltpu.PrefetchScalarGridSpec(
            num_scalar_prefetch=0,
            grid=(N, D),
            in_specs=[
                # Whole padded slab per batch element; block index ignores d so it
                # is only re-DMA'd when n changes.
                pl.BlockSpec((None, D + 2, H + 2, (W + 2) * C_in),
                             lambda n, d: (n, 0, 0, 0)),
                pl.BlockSpec((K * K, (W + 2) * C_in, W * C_out),
                             lambda n, d: (0, 0, 0)),
                pl.BlockSpec((1, W * C_out), lambda n, d: (0, 0)),
            ],
            # Lane-dense output block: (H, W*C_out) = (16, 128).
            out_specs=pl.BlockSpec((None, None, H, W * C_out),
                                   lambda n, d: (n, d, 0, 0)),
        ),
        compiler_params=pltpu.CompilerParams(
            dimension_semantics=("parallel", "parallel"),
            vmem_limit_bytes=32 * 1024 * 1024),
        cost_estimate=cost,
    )(xp, wband, shift_lanes)

    # (N, D, H, W*C_out) -> (N, D, H, W, C_out) -> (N, C_out, D, H, W)
    out = out.reshape(N, D, H, W, C_out)
    return jnp.transpose(out, (0, 4, 1, 2, 3))


if __name__ == "__main__":
    key = jax.random.PRNGKey(0)
    kx, kw, kg, kb, km, kv = jax.random.split(key, 6)

    # Small shapes consistent with the module (in_ch=4, out_ch=8).
    N, C_in, C_out, D, H, W = 2, 4, 8, 8, 16, 16

    x = jax.random.normal(kx, (N, C_in, D, H, W), jnp.float32)
    weight = 0.1 * jax.random.normal(kw, (C_out, C_in, K, K, K), jnp.float32)
    gamma = 1.0 + 0.1 * jax.random.normal(kg, (C_out,), jnp.float32)
    beta = 0.1 * jax.random.normal(kb, (C_out,), jnp.float32)
    running_mean = 0.1 * jax.random.normal(km, (C_out,), jnp.float32)
    running_var = jnp.abs(1.0 + 0.1 * jax.random.normal(kv, (C_out,), jnp.float32))

    out = conv_bn_relu_3d(x, weight, gamma, beta, running_mean, running_var)
    out = jax.block_until_ready(out)

    # Pure-JAX reference (same semantics) for a sanity check.
    ref_conv = lax.conv_general_dilated(
        x, weight, window_strides=(1, 1, 1),
        padding=((1, 1), (1, 1), (1, 1)),
        dimension_numbers=("NCDHW", "OIDHW", "NCDHW"))
    inv_std = 1.0 / jnp.sqrt(running_var + EPS)
    scale = (gamma * inv_std).reshape(1, C_out, 1, 1, 1)
    shift = (beta - running_mean * gamma * inv_std).reshape(1, C_out, 1, 1, 1)
    ref = ref_conv * scale + shift
    ref = jnp.where(ref >= 0, ref, LEAKY_SLOPE * ref)

    assert out.shape == (N, C_out, D, H, W)
    assert np.allclose(np.asarray(out), np.asarray(ref), atol=1e-4, rtol=1e-4)
    print("KERNEL_OK")
</pallas_src>

<mosaic_0001>
module attributes {stable_mosaic.version = 11 : i64} {
  func.func @conv_bn_lrelu_kernel(%arg0: i32, %arg1: i32, %arg2: memref<1x10x18x72xf32, #tpu.memory_space<vmem>>, %arg3: memref<9x72x128xf32, #tpu.memory_space<vmem>>, %arg4: memref<1x128xf32, #tpu.memory_space<vmem>>, %arg5: memref<1x1x16x128xf32, #tpu.memory_space<vmem>>) attributes {dimension_semantics = [#tpu.dimension_semantics<parallel>, #tpu.dimension_semantics<parallel>], iteration_bounds = array<i64: 2, 8>, scalar_prefetch = 0 : i64, scratch_operands = 0 : i64, tpu.core_type = #tpu.core_type<tc>, window_params = [{transform_indices = @transform_0, window_bounds = array<i64: 1, 10, 18, 72>}, {pipeline_mode = #tpu.pipeline_mode<synchronous>, transform_indices = @transform_1, window_bounds = array<i64: 9, 72, 128>}, {pipeline_mode = #tpu.pipeline_mode<synchronous>, transform_indices = @transform_2, window_bounds = array<i64: 1, 128>}, {transform_indices = @transform_3, window_bounds = array<i64: 1, 1, 16, 128>}]} {
    %cst = arith.constant 0.000000e+00 : f32
    %0 = vector.broadcast %cst : f32 to vector<16x128xf32>
    %c0_i32 = arith.constant 0 : i32
    %1 = arith.addi %arg1, %c0_i32 : i32
    %c0 = arith.constant 0 : index
    %2 = arith.index_cast %1 : i32 to index
    %c0_0 = arith.constant 0 : index
    %c0_1 = arith.constant 0 : index
    %3 = vector.load %arg2[%c0, %2, %c0_0, %c0_1] : memref<1x10x18x72xf32, #tpu.memory_space<vmem>>, vector<1x1x18x72xf32>
    %4 = vector.shape_cast %3 : vector<1x1x18x72xf32> to vector<18x72xf32>
    %5 = vector.extract_strided_slice %4 {offsets = [0, 0], sizes = [16, 72], strides = [1, 1]} : vector<18x72xf32> to vector<16x72xf32>
    %c0_2 = arith.constant 0 : index
    %c0_3 = arith.constant 0 : index
    %c0_4 = arith.constant 0 : index
    %6 = vector.load %arg3[%c0_2, %c0_3, %c0_4] : memref<9x72x128xf32, #tpu.memory_space<vmem>>, vector<1x72x128xf32>
    %7 = vector.shape_cast %6 : vector<1x72x128xf32> to vector<72x128xf32>
    %cst_5 = arith.constant dense<0.000000e+00> : vector<16x128xf32>
    %8 = tpu.matmul %5, %7, %cst_5 {dimension_numbers = #tpu.dot_dimension_numbers<[1], [0], [0], [1], [0, 0, 1, 1], [], []>} : vector<16x72xf32>, vector<72x128xf32>, vector<16x128xf32> -> vector<16x128xf32>
    %9 = arith.addf %0, %8 : vector<16x128xf32>
    %10 = vector.extract_strided_slice %4 {offsets = [1, 0], sizes = [16, 72], strides = [1, 1]} : vector<18x72xf32> to vector<16x72xf32>
    %c1 = arith.constant 1 : index
    %c0_6 = arith.constant 0 : index
    %c0_7 = arith.constant 0 : index
    %11 = vector.load %arg3[%c1, %c0_6, %c0_7] : memref<9x72x128xf32, #tpu.memory_space<vmem>>, vector<1x72x128xf32>
    %12 = vector.shape_cast %11 : vector<1x72x128xf32> to vector<72x128xf32>
    %cst_8 = arith.constant dense<0.000000e+00> : vector<16x128xf32>
    %13 = tpu.matmul %10, %12, %cst_8 {dimension_numbers = #tpu.dot_dimension_numbers<[1], [0], [0], [1], [0, 0, 1, 1], [], []>} : vector<16x72xf32>, vector<72x128xf32>, vector<16x128xf32> -> vector<16x128xf32>
    %14 = arith.addf %9, %13 : vector<16x128xf32>
    %15 = vector.extract_strided_slice %4 {offsets = [2, 0], sizes = [16, 72], strides = [1, 1]} : vector<18x72xf32> to vector<16x72xf32>
    %c2 = arith.constant 2 : index
    %c0_9 = arith.constant 0 : index
    %c0_10 = arith.constant 0 : index
    %16 = vector.load %arg3[%c2, %c0_9, %c0_10] : memref<9x72x128xf32, #tpu.memory_space<vmem>>, vector<1x72x128xf32>
    %17 = vector.shape_cast %16 : vector<1x72x128xf32> to vector<72x128xf32>
    %cst_11 = arith.constant dense<0.000000e+00> : vector<16x128xf32>
    %18 = tpu.matmul %15, %17, %cst_11 {dimension_numbers = #tpu.dot_dimension_numbers<[1], [0], [0], [1], [0, 0, 1, 1], [], []>} : vector<16x72xf32>, vector<72x128xf32>, vector<16x128xf32> -> vector<16x128xf32>
    %19 = arith.addf %14, %18 : vector<16x128xf32>
    %c1_i32 = arith.constant 1 : i32
    %20 = arith.addi %arg1, %c1_i32 : i32
    %c0_12 = arith.constant 0 : index
    %21 = arith.index_cast %20 : i32 to index
    %c0_13 = arith.constant 0 : index
    %c0_14 = arith.constant 0 : index
    %22 = vector.load %arg2[%c0_12, %21, %c0_13, %c0_14] : memref<1x10x18x72xf32, #tpu.memory_space<vmem>>, vector<1x1x18x72xf32>
    %23 = vector.shape_cast %22 : vector<1x1x18x72xf32> to vector<18x72xf32>
    %24 = vector.extract_strided_slice %23 {offsets = [0, 0], sizes = [16, 72], strides = [1, 1]} : vector<18x72xf32> to vector<16x72xf32>
    %c3 = arith.constant 3 : index
    %c0_15 = arith.constant 0 : index
    %c0_16 = arith.constant 0 : index
    %25 = vector.load %arg3[%c3, %c0_15, %c0_16] : memref<9x72x128xf32, #tpu.memory_space<vmem>>, vector<1x72x128xf32>
    %26 = vector.shape_cast %25 : vector<1x72x128xf32> to vector<72x128xf32>
    %cst_17 = arith.constant dense<0.000000e+00> : vector<16x128xf32>
    %27 = tpu.matmul %24, %26, %cst_17 {dimension_numbers = #tpu.dot_dimension_numbers<[1], [0], [0], [1], [0, 0, 1, 1], [], []>} : vector<16x72xf32>, vector<72x128xf32>, vector<16x128xf32> -> vector<16x128xf32>
    %28 = arith.addf %19, %27 : vector<16x128xf32>
    %29 = vector.extract_strided_slice %23 {offsets = [1, 0], sizes = [16, 72], strides = [1, 1]} : vector<18x72xf32> to vector<16x72xf32>
    %c4 = arith.constant 4 : index
    %c0_18 = arith.constant 0 : index
    %c0_19 = arith.constant 0 : index
    %30 = vector.load %arg3[%c4, %c0_18, %c0_19] : memref<9x72x128xf32, #tpu.memory_space<vmem>>, vector<1x72x128xf32>
    %31 = vector.shape_cast %30 : vector<1x72x128xf32> to vector<72x128xf32>
    %cst_20 = arith.constant dense<0.000000e+00> : vector<16x128xf32>
    %32 = tpu.matmul %29, %31, %cst_20 {dimension_numbers = #tpu.dot_dimension_numbers<[1], [0], [0], [1], [0, 0, 1, 1], [], []>} : vector<16x72xf32>, vector<72x128xf32>, vector<16x128xf32> -> vector<16x128xf32>
    %33 = arith.addf %28, %32 : vector<16x128xf32>
    %34 = vector.extract_strided_slice %23 {offsets = [2, 0], sizes = [16, 72], strides = [1, 1]} : vector<18x72xf32> to vector<16x72xf32>
    %c5 = arith.constant 5 : index
    %c0_21 = arith.constant 0 : index
    %c0_22 = arith.constant 0 : index
    %35 = vector.load %arg3[%c5, %c0_21, %c0_22] : memref<9x72x128xf32, #tpu.memory_space<vmem>>, vector<1x72x128xf32>
    %36 = vector.shape_cast %35 : vector<1x72x128xf32> to vector<72x128xf32>
    %cst_23 = arith.constant dense<0.000000e+00> : vector<16x128xf32>
    %37 = tpu.matmul %34, %36, %cst_23 {dimension_numbers = #tpu.dot_dimension_numbers<[1], [0], [0], [1], [0, 0, 1, 1], [], []>} : vector<16x72xf32>, vector<72x128xf32>, vector<16x128xf32> -> vector<16x128xf32>
    %38 = arith.addf %33, %37 : vector<16x128xf32>
    %c2_i32 = arith.constant 2 : i32
    %39 = arith.addi %arg1, %c2_i32 : i32
    %c0_24 = arith.constant 0 : index
    %40 = arith.index_cast %39 : i32 to index
    %c0_25 = arith.constant 0 : index
    %c0_26 = arith.constant 0 : index
    %41 = vector.load %arg2[%c0_24, %40, %c0_25, %c0_26] : memref<1x10x18x72xf32, #tpu.memory_space<vmem>>, vector<1x1x18x72xf32>
    %42 = vector.shape_cast %41 : vector<1x1x18x72xf32> to vector<18x72xf32>
    %43 = vector.extract_strided_slice %42 {offsets = [0, 0], sizes = [16, 72], strides = [1, 1]} : vector<18x72xf32> to vector<16x72xf32>
    %c6 = arith.constant 6 : index
    %c0_27 = arith.constant 0 : index
    %c0_28 = arith.constant 0 : index
    %44 = vector.load %arg3[%c6, %c0_27, %c0_28] : memref<9x72x128xf32, #tpu.memory_space<vmem>>, vector<1x72x128xf32>
    %45 = vector.shape_cast %44 : vector<1x72x128xf32> to vector<72x128xf32>
    %cst_29 = arith.constant dense<0.000000e+00> : vector<16x128xf32>
    %46 = tpu.matmul %43, %45, %cst_29 {dimension_numbers = #tpu.dot_dimension_numbers<[1], [0], [0], [1], [0, 0, 1, 1], [], []>} : vector<16x72xf32>, vector<72x128xf32>, vector<16x128xf32> -> vector<16x128xf32>
    %47 = arith.addf %38, %46 : vector<16x128xf32>
    %48 = vector.extract_strided_slice %42 {offsets = [1, 0], sizes = [16, 72], strides = [1, 1]} : vector<18x72xf32> to vector<16x72xf32>
    %c7 = arith.constant 7 : index
    %c0_30 = arith.constant 0 : index
    %c0_31 = arith.constant 0 : index
    %49 = vector.load %arg3[%c7, %c0_30, %c0_31] : memref<9x72x128xf32, #tpu.memory_space<vmem>>, vector<1x72x128xf32>
    %50 = vector.shape_cast %49 : vector<1x72x128xf32> to vector<72x128xf32>
    %cst_32 = arith.constant dense<0.000000e+00> : vector<16x128xf32>
    %51 = tpu.matmul %48, %50, %cst_32 {dimension_numbers = #tpu.dot_dimension_numbers<[1], [0], [0], [1], [0, 0, 1, 1], [], []>} : vector<16x72xf32>, vector<72x128xf32>, vector<16x128xf32> -> vector<16x128xf32>
    %52 = arith.addf %47, %51 : vector<16x128xf32>
    %53 = vector.extract_strided_slice %42 {offsets = [2, 0], sizes = [16, 72], strides = [1, 1]} : vector<18x72xf32> to vector<16x72xf32>
    %c8 = arith.constant 8 : index
    %c0_33 = arith.constant 0 : index
    %c0_34 = arith.constant 0 : index
    %54 = vector.load %arg3[%c8, %c0_33, %c0_34] : memref<9x72x128xf32, #tpu.memory_space<vmem>>, vector<1x72x128xf32>
    %55 = vector.shape_cast %54 : vector<1x72x128xf32> to vector<72x128xf32>
    %cst_35 = arith.constant dense<0.000000e+00> : vector<16x128xf32>
    %56 = tpu.matmul %53, %55, %cst_35 {dimension_numbers = #tpu.dot_dimension_numbers<[1], [0], [0], [1], [0, 0, 1, 1], [], []>} : vector<16x72xf32>, vector<72x128xf32>, vector<16x128xf32> -> vector<16x128xf32>
    %57 = arith.addf %52, %56 : vector<16x128xf32>
    %c0_36 = arith.constant 0 : index
    %c0_37 = arith.constant 0 : index
    %58 = vector.load %arg4[%c0_36, %c0_37] : memref<1x128xf32, #tpu.memory_space<vmem>>, vector<1x128xf32>
    %59 = vector.shape_cast %58 : vector<1x128xf32> to vector<128xf32>
    %60 = vector.shape_cast %59 : vector<128xf32> to vector<1x128xf32>
    %61 = vector.broadcast %60 : vector<1x128xf32> to vector<16x128xf32>
    %62 = arith.addf %57, %61 : vector<16x128xf32>
    %cst_38 = arith.constant 0.000000e+00 : f32
    %63 = vector.broadcast %cst_38 : f32 to vector<16x128xf32>
    %64 = arith.cmpf oge, %62, %63 : vector<16x128xf32>
    %cst_39 = arith.constant 0.00999999977 : f32
    %65 = vector.broadcast %cst_39 : f32 to vector<16x128xf32>
    %66 = arith.mulf %65, %62 : vector<16x128xf32>
    %67 = arith.select %64, %62, %66 : vector<16x128xi1>, vector<16x128xf32>
    %c0_40 = arith.constant 0 : index
    %c0_41 = arith.constant 0 : index
    %c0_42 = arith.constant 0 : index
    %c0_43 = arith.constant 0 : index
    %68 = vector.load %arg5[%c0_40, %c0_41, %c0_42, %c0_43] : memref<1x1x16x128xf32, #tpu.memory_space<vmem>>, vector<1x1x16x128xf32>
    %69 = vector.shape_cast %68 : vector<1x1x16x128xf32> to vector<16x128xf32>
    %70 = vector.shape_cast %67 : vector<16x128xf32> to vector<1x1x16x128xf32>
    tpu.vector_store %arg5[%c0_40, %c0_41, %c0_42, %c0_43], %70 {strides = array<i32>} : memref<1x1x16x128xf32, #tpu.memory_space<vmem>>, vector<1x1x16x128xf32>,
    return
  }
  func.func @transform_0(%arg0: i32, %arg1: i32) -> (i32, i32, i32, i32) {
    %c0_i32 = arith.constant 0 : i32
    %c0_i32_0 = arith.constant 0 : i32
    %c0_i32_1 = arith.constant 0 : i32
    %c0_i32_2 = arith.constant 0 : i32
    return %arg0, %c0_i32, %c0_i32_0, %c0_i32_1 : i32, i32, i32, i32
  }
  func.func @transform_1(%arg0: i32, %arg1: i32) -> (i32, i32, i32) {
    %c0_i32 = arith.constant 0 : i32
    %c0_i32_0 = arith.constant 0 : i32
    %c0_i32_1 = arith.constant 0 : i32
    %c0_i32_2 = arith.constant 0 : i32
    return %c0_i32, %c0_i32_0, %c0_i32_1 : i32, i32, i32
  }
  func.func @transform_2(%arg0: i32, %arg1: i32) -> (i32, i32) {
    %c0_i32 = arith.constant 0 : i32
    %c0_i32_0 = arith.constant 0 : i32
    %c0_i32_1 = arith.constant 0 : i32
    return %c0_i32, %c0_i32_0 : i32, i32
  }
  func.func @transform_3(%arg0: i32, %arg1: i32) -> (i32, i32, i32, i32) {
    %c0_i32 = arith.constant 0 : i32
    %c0_i32_0 = arith.constant 0 : i32
    %c0_i32_1 = arith.constant 0 : i32
    return %arg0, %arg1, %c0_i32, %c0_i32_0 : i32, i32, i32, i32
  }
}

</mosaic_0001>

<llo_original>
// kernel: tpu_custom_call.1
$region0: #{tpu_custom_call.1}
  #allocation0 [shape = 'u32[]', space=smem, size = 0x4, offset = 0x4, fixed_abs, tag = 'smem constant byte address 0x4 - core index']
  #allocation1 [shape = 'u32[72,128]{1,0:T(1,128)}', space=vmem, size = 0x9000, scoped, tag = 'internal scratch']
  %s0 = inlined_call_operand.vmem [shape: f32[2,10,18,72], index: 0, kind: input, shape index: {}]
  %s1 = inlined_call_operand.vmem [shape: f32[9,72,128], index: 1, kind: input, shape index: {}]
  %s2 = inlined_call_operand.vmem [shape: f32[1,128], index: 2, kind: input, shape index: {}]
  %s3 = inlined_call_operand.hbm [shape: f32[2,8,16,128], index: 3, kind: output, shape index: {}]
  %s4 = sld [smem:[#allocation0]]
  $region45: #{tpu_custom_call.1} parent=0
    _
  %s6 = ssub.s32 1, %s4
  %s7 = scalar_select 0, %s6, %s4
  $region1: #{tpu_custom_call.1} parent=0
    #allocation2 [shape = 'u8[16384]{0}', space=vmem, size = 0x4000, scoped, tag = 'output window, operand 0']
    #allocation3 [shape = 's32[2]{0}', space=sflag, size = 0x8, scoped, tag = 'scoped memory for tpu_custom_call.1']
    %8 = vsyncpa [#allocation3], 0
    %s9 = scalar_lea.sflag [#allocation3], 1
    %10 = vsyncpa %s9, 0
    loop: start=0, step=1, limit=18
    $region2: #{tpu_custom_call.1} parent=1 // loop_pre_header
      _
    $region3: #{tpu_custom_call.1} parent=1 // loop_header
      %s12 = sphi 0, %s16
      %p13 = scmp.ge.s32.totalorder %s12, 18
      %s19 = sphi 0, %s31
      %s20 = sphi 0, %s27
      %s21 = sphi 0, %s19
      %s22 = sphi 0, %s20
      %s23 = sphi 0, %s21
      %s24 = sphi 0, %s22
      %s34 = sphi 0, %s36
      %s37 = sphi 0, %s34
      %s38 = sphi 0, %s37
      %s54 = sphi 0, %s38
      %s58 = sphi 0, %s58
      %s60 = sphi 0, %s58
      %s61 = sphi 0, %s60
      %s75 = sphi 0, %s61
      %s79 = sphi 0, %s79
      %s81 = sphi 0, %s79
      %s82 = sphi 0, %s81
      %s96 = sphi 0, %s82
      %s104 = sphi 0, %s106
      %s107 = sphi 0, %s104
      %s108 = sphi 0, %s107
      %s124 = sphi 0, %s108
    $region4: #{tpu_custom_call.1} parent=1 // loop_header_branch
      %15 = sbr.rel (%p13) target = $region8
    $region5: #{tpu_custom_call.1} parent=1 // loop_body
      %s17 = ssub.s32 %s12, 1
      %s18 = ssub.s32 %s12, 2
      %s25 = sadd.s32 1, %s20
      %p26 = scmp.ge.s32.totalorder %s25, 8
      %s27 = scalar_select %p26, 0, %s25
      %s28 = sadd.s32 1, %s19
      %s29 = scalar_select %p26, %s28, %s19
      %p30 = scmp.ge.s32.totalorder %s29, 2
      %s31 = scalar_select %p30, 0, %s29
      %s32 = ssub.s32 %s19, %s31
      %p33 = scmp.eq.s32.totalorder %s32, 0
      %s35 = sadd.s32 %s34, 1
      %s36 = scalar_select %p33, %s34, %s35
      %p39 = pneg %p33
      %p40 = scmp.eq.s32.totalorder %s12, 15
      %p41 = por %p39, %p40
      %p42 = scmp.ne.s32.totalorder %s34, %s37
      %p43 = scmp.eq.s32.totalorder %s12, 0
      %p44 = por %p42, %p43
      %p45 = scmp.ne.s32.totalorder %s34, %s37
      %p46 = scmp.eq.s32.totalorder %s17, 15
      %p47 = por %p45, %p46
      %p48 = scmp.ne.s32.totalorder %s37, %s38
      %p49 = scmp.eq.s32.totalorder %s17, 0
      %p50 = por %p48, %p49
      %p51 = scmp.ne.s32.totalorder %s37, %s38
      %p52 = scmp.eq.s32.totalorder %s18, 15
      %p53 = por %p51, %p52
      %p55 = scmp.ne.s32.totalorder %s38, %s54
      %p56 = scmp.eq.s32.totalorder %s18, 0
      %p57 = por %p55, %p56
      %s59 = sadd.s32 %s58, 1
      %p62 = scmp.eq.s32.totalorder %s12, 15
      %p63 = scmp.ne.s32.totalorder %s58, %s60
      %p64 = scmp.eq.s32.totalorder %s12, 0
      %p65 = por %p63, %p64
      %p66 = scmp.ne.s32.totalorder %s58, %s60
      %p67 = scmp.eq.s32.totalorder %s17, 15
      %p68 = por %p66, %p67
      %p69 = scmp.ne.s32.totalorder %s60, %s61
      %p70 = scmp.eq.s32.totalorder %s17, 0
      %p71 = por %p69, %p70
      %p72 = scmp.ne.s32.totalorder %s60, %s61
      %p73 = scmp.eq.s32.totalorder %s18, 15
      %p74 = por %p72, %p73
      %p76 = scmp.ne.s32.totalorder %s61, %s75
      %p77 = scmp.eq.s32.totalorder %s18, 0
      %p78 = por %p76, %p77
      %s80 = sadd.s32 %s79, 1
      %p83 = scmp.eq.s32.totalorder %s12, 15
      %p84 = scmp.ne.s32.totalorder %s79, %s81
      %p85 = scmp.eq.s32.totalorder %s12, 0
      %p86 = por %p84, %p85
      %p87 = scmp.ne.s32.totalorder %s79, %s81
      %p88 = scmp.eq.s32.totalorder %s17, 15
      %p89 = por %p87, %p88
      %p90 = scmp.ne.s32.totalorder %s81, %s82
      %p91 = scmp.eq.s32.totalorder %s17, 0
      %p92 = por %p90, %p91
      %p93 = scmp.ne.s32.totalorder %s81, %s82
      %p94 = scmp.eq.s32.totalorder %s18, 15
      %p95 = por %p93, %p94
      %p97 = scmp.ne.s32.totalorder %s82, %s96
      %p98 = scmp.eq.s32.totalorder %s18, 0
      %p99 = por %p97, %p98
      %s100 = ssub.s32 %s19, %s31
      %s101 = ssub.s32 %s20, %s27
      %s102 = sor.u32 %s100, %s101
      %p103 = scmp.eq.s32.totalorder %s102, 0
      %s105 = sadd.s32 %s104, 1
      %s106 = scalar_select %p103, %s104, %s105
      %p109 = pneg %p103
      %p110 = scmp.eq.s32.totalorder %s12, 15
      %p111 = por %p109, %p110
      %p112 = scmp.ne.s32.totalorder %s104, %s107
      %p113 = scmp.eq.s32.totalorder %s12, 0
      %p114 = por %p112, %p113
      %p115 = scmp.ne.s32.totalorder %s104, %s107
      %p116 = scmp.eq.s32.totalorder %s17, 15
      %p117 = por %p115, %p116
      %p118 = scmp.ne.s32.totalorder %s107, %s108
      %p119 = scmp.eq.s32.totalorder %s17, 0
      %p120 = por %p118, %p119
      %p121 = scmp.ne.s32.totalorder %s107, %s108
      %p122 = scmp.eq.s32.totalorder %s18, 15
      %p123 = por %p121, %p122
      %p125 = scmp.ne.s32.totalorder %s108, %s124
      %p126 = scmp.eq.s32.totalorder %s18, 0
      %p127 = por %p125, %p126
      %p128 = scmp.le.s32.totalorder 1, %s12
      %p129 = scmp.lt.s32.totalorder %s12, 17
      %p130 = pnand %p128, %p129
      %p131 = pneg %p130
      // Predicated region
      $region9: #{tpu_custom_call.1} parent=5 // pred_check
        _
      $region10: #{tpu_custom_call.1} parent=5 // pred_check_branch
        %133 = sbr.rel (%p130) target = $region12
      $region11: #{tpu_custom_call.1} parent=5 // pred_region
        %s134 = ssub.s32 %s12, 1
        // Predicated region
        $region13: #{tpu_custom_call.1} parent=11 // pred_check
          %p135 = pneg %p71
        $region14: #{tpu_custom_call.1} parent=11 // pred_check_branch
          %137 = sbr.rel (%p135) target = $region16
        $region15: #{tpu_custom_call.1} parent=11 // pred_region
          _
        $region16: #{tpu_custom_call.1} parent=11 // pred_fallthru
          _
        // Predicated region
        $region17: #{tpu_custom_call.1} parent=11 // pred_check
          %p138 = pneg %p92
        $region18: #{tpu_custom_call.1} parent=11 // pred_check_branch
          %140 = sbr.rel (%p138) target = $region20
        $region19: #{tpu_custom_call.1} parent=11 // pred_region
          _
        $region20: #{tpu_custom_call.1} parent=11 // pred_fallthru
          _
      $region12: #{tpu_custom_call.1} parent=5 // pred_fallthru
        _
      %p141 = scmp.lt.s32.totalorder %s12, 16
      // Predicated region
      $region21: #{tpu_custom_call.1} parent=5 // pred_check
        %p142 = pneg %p141
      $region22: #{tpu_custom_call.1} parent=5 // pred_check_branch
        %144 = sbr.rel (%p142) target = $region24
      $region23: #{tpu_custom_call.1} parent=5 // pred_region
        // Predicated region
        $region25: #{tpu_custom_call.1} parent=23 // pred_check
          %p145 = pneg %p44
        $region26: #{tpu_custom_call.1} parent=23 // pred_check_branch
          %147 = sbr.rel (%p145) target = $region28
        $region27: #{tpu_custom_call.1} parent=23 // pred_region
          %p148 = scmp.lt.s32.totalorder %s19, 1
          %s149 = scalar_select %p148, %s19, 1
          %s150 = smul.addr %s149, 30
          %s151 = smul.addr %s150, 8
          %s152 = scalar_lea.vmem %s0, %s151
        $region28: #{tpu_custom_call.1} parent=23 // pred_fallthru
          _
      $region24: #{tpu_custom_call.1} parent=5 // pred_fallthru
        _
      %p153 = scmp.le.s32.totalorder 1, %s12
      %p154 = scmp.lt.s32.totalorder %s12, 17
      %p155 = pnand %p153, %p154
      %p156 = pneg %p155
      // Predicated region
      $region29: #{tpu_custom_call.1} parent=5 // pred_check
        _
      $region30: #{tpu_custom_call.1} parent=5 // pred_check_branch
        %158 = sbr.rel (%p155) target = $region32
      $region31: #{tpu_custom_call.1} parent=5 // pred_region
        %s159 = ssub.s32 %s12, 1
        %p160 = scmp.lt.s32.totalorder %s21, 1
        %s161 = scalar_select %p160, %s21, 1
        %s162 = smul.addr %s161, 30
        %s163 = smul.addr %s162, 8
        %s164 = scalar_lea.vmem %s0, %s163
        %p165 = pneg %p50
        %p166 = pneg %p47
        %p167 = pneg %p71
        %p168 = pneg %p68
        %p169 = pneg %p92
        %p170 = pneg %p89
        %p171 = pneg %p120
        %p172 = pneg %p117
        %s173 = sand.u32 %s107, 1
        %s174 = scalar_lea.sflag [#allocation3], %s173
        %s175 = sand.u32 %s107, 1
        %s176 = smul.addr %s175, 16
        %s177 = scalar_lea.vmem [#allocation2], %s176
        %p178 = scmp.lt.s32.totalorder %s21, 1
        %s179 = scalar_select %p178, %s21, 1
        %s180 = smul.addr %s179, 30
        %s181 = smul.addr %s180, 8
        %s182 = scalar_lea.vmem %s0, %s181
        %s183 = smul.u32 %s22, 24
        %s184 = scalar_lea.vmem %s182, %s183
        %v185 = vld [vmem:[%s184] sm:$0xff]
        %v186 = vld [vmem:[%s184 + $0x8] sm:$0xff]
        %v187 = vld [vmem:[%s184 + $0x10] sm:$0x3]
        %v188 = vld [vmem:[%s1] sm:$0xff]
        %v189 = vld [vmem:[%s1 + $0x8] sm:$0xff]
        %v190 = vld [vmem:[%s1 + $0x10] sm:$0xff]
        %v191 = vld [vmem:[%s1 + $0x18] sm:$0xff]
        %v192 = vld [vmem:[%s1 + $0x20] sm:$0xff]
        %v193 = vld [vmem:[%s1 + $0x28] sm:$0xff]
        %v194 = vld [vmem:[%s1 + $0x30] sm:$0xff]
        %v195 = vld [vmem:[%s1 + $0x38] sm:$0xff]
        %v196 = vld [vmem:[%s1 + $0x40] sm:$0xff]
        %s197 = scalar_lea.vmem %s1, 72
        %v198 = vld [vmem:[%s197] sm:$0xff]
        %v199 = vld [vmem:[%s197 + $0x8] sm:$0xff]
        %v200 = vld [vmem:[%s197 + $0x10] sm:$0xff]
        %v201 = vld [vmem:[%s197 + $0x18] sm:$0xff]
        %v202 = vld [vmem:[%s197 + $0x20] sm:$0xff]
        %v203 = vld [vmem:[%s197 + $0x28] sm:$0xff]
        %v204 = vld [vmem:[%s197 + $0x30] sm:$0xff]
        %v205 = vld [vmem:[%s197 + $0x38] sm:$0xff]
        %v206 = vld [vmem:[%s197 + $0x40] sm:$0xff]
        %vm210 = vcmask 1046528
        %v211 = vrot.slane %v185, 1
        %v212 = vrot.slane %v186, 1
        %v213 = vsel %vm210, %v211, %v212
        %v214 = vrot.slane %v187, 1
        %v215 = vsel %vm210, %v212, %v214
        %vm216 = vcmask 588800
        %v217 = vsel %vm216, %v213, 0
        %v219 = vsel %vm216, %v215, 0
        %221 = vmatpush.msra.mxu0 0.0
        %222 = vmatpush.msra.mxu0 0.0
        %223 = vmatpush.msra.mxu0 0.0
        %224 = vmatpush.msra.mxu0 0.0
        %225 = vmatpush.msra.mxu0 0.0
        %226 = vmatpush.msra.mxu0 0.0
        %227 = vmatpush.msra.mxu0 0.0
        %228 = vmatpush.msra.mxu0 %v206
        %229 = vmatpush.msra.mxu0 %v205
        %230 = vmatpush.msra.mxu0 %v204
        %231 = vmatpush.msra.mxu0 %v203
        %232 = vmatpush.msra.mxu0 %v202
        %233 = vmatpush.msra.mxu0 %v201
        %234 = vmatpush.msra.mxu0 %v200
        %235 = vmatpush.msra.mxu0 %v199
        %236 = vmatpush.msra.mxu0 %v198
        %237 = vmatmul.f32.gmra.mxu0 %v217
        %v238 = vpop.f32.mrf.mxu0
        %v239 = vadd.f32 0.0, %v238
        %240 = vmatmul.f32.gmra.mxu0 %v219
        %v241 = vpop.f32.mrf.mxu0
        %v242 = vadd.f32 0.0, %v241
        %243 = vdwg.mxu0
        %v244 = vsel %vm216, %v185, 0
        %v246 = vsel %vm216, %v186, 0
        %248 = vmatpush.msra.mxu0 0.0
        %249 = vmatpush.msra.mxu0 0.0
        %250 = vmatpush.msra.mxu0 0.0
        %251 = vmatpush.msra.mxu0 0.0
        %252 = vmatpush.msra.mxu0 0.0
        %253 = vmatpush.msra.mxu0 0.0
        %254 = vmatpush.msra.mxu0 0.0
        %255 = vmatpush.msra.mxu0 %v196
        %256 = vmatpush.msra.mxu0 %v195
        %257 = vmatpush.msra.mxu0 %v194
        %258 = vmatpush.msra.mxu0 %v193
        %259 = vmatpush.msra.mxu0 %v192
        %260 = vmatpush.msra.mxu0 %v191
        %261 = vmatpush.msra.mxu0 %v190
        %262 = vmatpush.msra.mxu0 %v189
        %263 = vmatpush.msra.mxu0 %v188
        %264 = vmatmul.f32.gmra.mxu0 %v244
        %v265 = vpop.f32.mrf.mxu0
        %v266 = vadd.f32 %v239, %v265
        %267 = vmatmul.f32.gmra.mxu0 %v246
        %v268 = vpop.f32.mrf.mxu0
        %v269 = vadd.f32 %v242, %v268
        %270 = vdwg.mxu0
        %s271 = scalar_lea.vmem %s1, 144
        %v272 = vld [vmem:[%s271] sm:$0xff]
        %v273 = vld [vmem:[%s271 + $0x8] sm:$0xff]
        %v274 = vld [vmem:[%s271 + $0x10] sm:$0xff]
        %v275 = vld [vmem:[%s271 + $0x18] sm:$0xff]
        %v276 = vld [vmem:[%s271 + $0x20] sm:$0xff]
        %v277 = vld [vmem:[%s271 + $0x28] sm:$0xff]
        %v278 = vld [vmem:[%s271 + $0x30] sm:$0xff]
        %v279 = vld [vmem:[%s271 + $0x38] sm:$0xff]
        %v280 = vld [vmem:[%s271 + $0x40] sm:$0xff]
        %vm281 = vcmask 1045504
        %v282 = vrot.slane %v185, 2
        %v283 = vrot.slane %v186, 2
        %v284 = vsel %vm281, %v282, %v283
        %v285 = vrot.slane %v187, 2
        %v286 = vsel %vm281, %v283, %v285
        %v287 = vsel %vm216, %v284, 0
        %v289 = vsel %vm216, %v286, 0
        %291 = vmatpush.msra.mxu0 0.0
        %292 = vmatpush.msra.mxu0 0.0
        %293 = vmatpush.msra.mxu0 0.0
        %294 = vmatpush.msra.mxu0 0.0
        %295 = vmatpush.msra.mxu0 0.0
        %296 = vmatpush.msra.mxu0 0.0
        %297 = vmatpush.msra.mxu0 0.0
        %298 = vmatpush.msra.mxu0 %v280
        %299 = vmatpush.msra.mxu0 %v279
        %300 = vmatpush.msra.mxu0 %v278
        %301 = vmatpush.msra.mxu0 %v277
        %302 = vmatpush.msra.mxu0 %v276
        %303 = vmatpush.msra.mxu0 %v275
        %304 = vmatpush.msra.mxu0 %v274
        %305 = vmatpush.msra.mxu0 %v273
        %306 = vmatpush.msra.mxu0 %v272
        %307 = vmatmul.f32.gmra.mxu0 %v287
        %v308 = vpop.f32.mrf.mxu0
        %v309 = vadd.f32 0.0, %v308
        %310 = vmatmul.f32.gmra.mxu0 %v289
        %v311 = vpop.f32.mrf.mxu0
        %v312 = vadd.f32 0.0, %v311
        %313 = vdwg.mxu0
        %v314 = vadd.f32 %v266, %v309
        %v315 = vadd.f32 %v269, %v312
        %s316 = sadd.s32 %s22, 1
        %s317 = smul.u32 %s316, 24
        %s318 = scalar_lea.vmem %s182, %s317
        %v319 = vld [vmem:[%s318] sm:$0xff]
        %v320 = vld [vmem:[%s318 + $0x8] sm:$0xff]
        %v321 = vld [vmem:[%s318 + $0x10] sm:$0x3]
        %s322 = scalar_lea.vmem %s1, 216
        %v323 = vld [vmem:[%s322] sm:$0xff]
        %v324 = vld [vmem:[%s322 + $0x8] sm:$0xff]
        %v325 = vld [vmem:[%s322 + $0x10] sm:$0xff]
        %v326 = vld [vmem:[%s322 + $0x18] sm:$0xff]
        %v327 = vld [vmem:[%s322 + $0x20] sm:$0xff]
        %v328 = vld [vmem:[%s322 + $0x28] sm:$0xff]
        %v329 = vld [vmem:[%s322 + $0x30] sm:$0xff]
        %v330 = vld [vmem:[%s322 + $0x38] sm:$0xff]
        %v331 = vld [vmem:[%s322 + $0x40] sm:$0xff]
        %v333 = vsel %vm216, %v319, 0
        %v336 = vsel %vm216, %v320, 0
        %338 = vmatpush.msra.mxu0 0.0
        %339 = vmatpush.msra.mxu0 0.0
        %340 = vmatpush.msra.mxu0 0.0
        %341 = vmatpush.msra.mxu0 0.0
        %342 = vmatpush.msra.mxu0 0.0
        %343 = vmatpush.msra.mxu0 0.0
        %344 = vmatpush.msra.mxu0 0.0
        %345 = vmatpush.msra.mxu0 %v331
        %346 = vmatpush.msra.mxu0 %v330
        %347 = vmatpush.msra.mxu0 %v329
        %348 = vmatpush.msra.mxu0 %v328
        %349 = vmatpush.msra.mxu0 %v327
        %350 = vmatpush.msra.mxu0 %v326
        %351 = vmatpush.msra.mxu0 %v325
        %352 = vmatpush.msra.mxu0 %v324
        %353 = vmatpush.msra.mxu0 %v323
        %354 = vmatmul.f32.gmra.mxu0 %v333
        %v355 = vpop.f32.mrf.mxu0
        %v356 = vadd.f32 0.0, %v355
        %357 = vmatmul.f32.gmra.mxu0 %v336
        %v358 = vpop.f32.mrf.mxu0
        %v359 = vadd.f32 0.0, %v358
        %360 = vdwg.mxu0
        %v361 = vadd.f32 %v314, %v356
        %v362 = vadd.f32 %v315, %v359
        %s363 = scalar_lea.vmem %s1, 288
        %v364 = vld [vmem:[%s363] sm:$0xff]
        %v365 = vld [vmem:[%s363 + $0x8] sm:$0xff]
        %v366 = vld [vmem:[%s363 + $0x10] sm:$0xff]
        %v367 = vld [vmem:[%s363 + $0x18] sm:$0xff]
        %v368 = vld [vmem:[%s363 + $0x20] sm:$0xff]
        %v369 = vld [vmem:[%s363 + $0x28] sm:$0xff]
        %v370 = vld [vmem:[%s363 + $0x30] sm:$0xff]
        %v371 = vld [vmem:[%s363 + $0x38] sm:$0xff]
        %v372 = vld [vmem:[%s363 + $0x40] sm:$0xff]
        %v374 = vrot.slane %v319, 1
        %v375 = vrot.slane %v320, 1
        %v376 = vsel %vm210, %v374, %v375
        %v377 = vrot.slane %v321, 1
        %v378 = vsel %vm210, %v375, %v377
        %v379 = vsel %vm216, %v376, 0
        %v381 = vsel %vm216, %v378, 0
        %383 = vmatpush.msra.mxu0 0.0
        %384 = vmatpush.msra.mxu0 0.0
        %385 = vmatpush.msra.mxu0 0.0
        %386 = vmatpush.msra.mxu0 0.0
        %387 = vmatpush.msra.mxu0 0.0
        %388 = vmatpush.msra.mxu0 0.0
        %389 = vmatpush.msra.mxu0 0.0
        %390 = vmatpush.msra.mxu0 %v372
        %391 = vmatpush.msra.mxu0 %v371
        %392 = vmatpush.msra.mxu0 %v370
        %393 = vmatpush.msra.mxu0 %v369
        %394 = vmatpush.msra.mxu0 %v368
        %395 = vmatpush.msra.mxu0 %v367
        %396 = vmatpush.msra.mxu0 %v366
        %397 = vmatpush.msra.mxu0 %v365
        %398 = vmatpush.msra.mxu0 %v364
        %399 = vmatmul.f32.gmra.mxu0 %v379
        %v400 = vpop.f32.mrf.mxu0
        %v401 = vadd.f32 0.0, %v400
        %402 = vmatmul.f32.gmra.mxu0 %v381
        %v403 = vpop.f32.mrf.mxu0
        %v404 = vadd.f32 0.0, %v403
        %405 = vdwg.mxu0
        %v406 = vadd.f32 %v361, %v401
        %v407 = vadd.f32 %v362, %v404
        %s408 = scalar_lea.vmem %s1, 360
        %v409 = vld [vmem:[%s408] sm:$0xff]
        %v410 = vld [vmem:[%s408 + $0x8] sm:$0xff]
        %v411 = vld [vmem:[%s408 + $0x10] sm:$0xff]
        %v412 = vld [vmem:[%s408 + $0x18] sm:$0xff]
        %v413 = vld [vmem:[%s408 + $0x20] sm:$0xff]
        %v414 = vld [vmem:[%s408 + $0x28] sm:$0xff]
        %v415 = vld [vmem:[%s408 + $0x30] sm:$0xff]
        %v416 = vld [vmem:[%s408 + $0x38] sm:$0xff]
        %v417 = vld [vmem:[%s408 + $0x40] sm:$0xff]
        %v418 = vrot.slane %v319, 2
        %v419 = vrot.slane %v320, 2
        %v420 = vsel %vm281, %v418, %v419
        %v421 = vrot.slane %v321, 2
        %v422 = vsel %vm281, %v419, %v421
        %v423 = vsel %vm216, %v420, 0
        %v425 = vsel %vm216, %v422, 0
        %427 = vmatpush.msra.mxu0 0.0
        %428 = vmatpush.msra.mxu0 0.0
        %429 = vmatpush.msra.mxu0 0.0
        %430 = vmatpush.msra.mxu0 0.0
        %431 = vmatpush.msra.mxu0 0.0
        %432 = vmatpush.msra.mxu0 0.0
        %433 = vmatpush.msra.mxu0 0.0
        %434 = vmatpush.msra.mxu0 %v417
        %435 = vmatpush.msra.mxu0 %v416
        %436 = vmatpush.msra.mxu0 %v415
        %437 = vmatpush.msra.mxu0 %v414
        %438 = vmatpush.msra.mxu0 %v413
        %439 = vmatpush.msra.mxu0 %v412
        %440 = vmatpush.msra.mxu0 %v411
        %441 = vmatpush.msra.mxu0 %v410
        %442 = vmatpush.msra.mxu0 %v409
        %443 = vmatmul.f32.gmra.mxu0 %v423
        %v444 = vpop.f32.mrf.mxu0
        %v445 = vadd.f32 0.0, %v444
        %446 = vmatmul.f32.gmra.mxu0 %v425
        %v447 = vpop.f32.mrf.mxu0
        %v448 = vadd.f32 0.0, %v447
        %449 = vdwg.mxu0
        %v450 = vadd.f32 %v406, %v445
        %v451 = vadd.f32 %v407, %v448
        %s452 = sadd.s32 %s22, 2
        %s453 = smul.u32 %s452, 24
        %s454 = scalar_lea.vmem %s182, %s453
        %v455 = vld [vmem:[%s454] sm:$0xff]
        %v456 = vld [vmem:[%s454 + $0x8] sm:$0xff]
        %v457 = vld [vmem:[%s454 + $0x10] sm:$0x3]
        %s458 = scalar_lea.vmem %s1, 432
        %v459 = vld [vmem:[%s458] sm:$0xff]
        %v460 = vld [vmem:[%s458 + $0x8] sm:$0xff]
        %v461 = vld [vmem:[%s458 + $0x10] sm:$0xff]
        %v462 = vld [vmem:[%s458 + $0x18] sm:$0xff]
        %v463 = vld [vmem:[%s458 + $0x20] sm:$0xff]
        %v464 = vld [vmem:[%s458 + $0x28] sm:$0xff]
        %v465 = vld [vmem:[%s458 + $0x30] sm:$0xff]
        %v466 = vld [vmem:[%s458 + $0x38] sm:$0xff]
        %v467 = vld [vmem:[%s458 + $0x40] sm:$0xff]
        %v469 = vsel %vm216, %v455, 0
        %v472 = vsel %vm216, %v456, 0
        %474 = vmatpush.msra.mxu0 0.0
        %475 = vmatpush.msra.mxu0 0.0
        %476 = vmatpush.msra.mxu0 0.0
        %477 = vmatpush.msra.mxu0 0.0
        %478 = vmatpush.msra.mxu0 0.0
        %479 = vmatpush.msra.mxu0 0.0
        %480 = vmatpush.msra.mxu0 0.0
        %481 = vmatpush.msra.mxu0 %v467
        %482 = vmatpush.msra.mxu0 %v466
        %483 = vmatpush.msra.mxu0 %v465
        %484 = vmatpush.msra.mxu0 %v464
        %485 = vmatpush.msra.mxu0 %v463
        %486 = vmatpush.msra.mxu0 %v462
        %487 = vmatpush.msra.mxu0 %v461
        %488 = vmatpush.msra.mxu0 %v460
        %489 = vmatpush.msra.mxu0 %v459
        %490 = vmatmul.f32.gmra.mxu0 %v469
        %v491 = vpop.f32.mrf.mxu0
        %v492 = vadd.f32 0.0, %v491
        %493 = vmatmul.f32.gmra.mxu0 %v472
        %v494 = vpop.f32.mrf.mxu0
        %v495 = vadd.f32 0.0, %v494
        %496 = vdwg.mxu0
        %v497 = vadd.f32 %v450, %v492
        %v498 = vadd.f32 %v451, %v495
        %s499 = scalar_lea.vmem %s1, 504
        %v500 = vld [vmem:[%s499] sm:$0xff]
        %v501 = vld [vmem:[%s499 + $0x8] sm:$0xff]
        %v502 = vld [vmem:[%s499 + $0x10] sm:$0xff]
        %v503 = vld [vmem:[%s499 + $0x18] sm:$0xff]
        %v504 = vld [vmem:[%s499 + $0x20] sm:$0xff]
        %v505 = vld [vmem:[%s499 + $0x28] sm:$0xff]
        %v506 = vld [vmem:[%s499 + $0x30] sm:$0xff]
        %v507 = vld [vmem:[%s499 + $0x38] sm:$0xff]
        %v508 = vld [vmem:[%s499 + $0x40] sm:$0xff]
        %v510 = vrot.slane %v455, 1
        %v511 = vrot.slane %v456, 1
        %v512 = vsel %vm210, %v510, %v511
        %v513 = vrot.slane %v457, 1
        %v514 = vsel %vm210, %v511, %v513
        %v515 = vsel %vm216, %v512, 0
        %v517 = vsel %vm216, %v514, 0
        %519 = vmatpush.msra.mxu0 0.0
        %520 = vmatpush.msra.mxu0 0.0
        %521 = vmatpush.msra.mxu0 0.0
        %522 = vmatpush.msra.mxu0 0.0
        %523 = vmatpush.msra.mxu0 0.0
        %524 = vmatpush.msra.mxu0 0.0
        %525 = vmatpush.msra.mxu0 0.0
        %526 = vmatpush.msra.mxu0 %v508
        %527 = vmatpush.msra.mxu0 %v507
        %528 = vmatpush.msra.mxu0 %v506
        %529 = vmatpush.msra.mxu0 %v505
        %530 = vmatpush.msra.mxu0 %v504
        %531 = vmatpush.msra.mxu0 %v503
        %532 = vmatpush.msra.mxu0 %v502
        %533 = vmatpush.msra.mxu0 %v501
        %534 = vmatpush.msra.mxu0 %v500
        %535 = vmatmul.f32.gmra.mxu0 %v515
        %v536 = vpop.f32.mrf.mxu0
        %v537 = vadd.f32 0.0, %v536
        %538 = vmatmul.f32.gmra.mxu0 %v517
        %v539 = vpop.f32.mrf.mxu0
        %v540 = vadd.f32 0.0, %v539
        %541 = vdwg.mxu0
        %v542 = vadd.f32 %v497, %v537
        %v543 = vadd.f32 %v498, %v540
        %s544 = scalar_lea.vmem %s1, 576
        %v545 = vld [vmem:[%s544] sm:$0xff]
        %v546 = vld [vmem:[%s544 + $0x8] sm:$0xff]
        %v547 = vld [vmem:[%s544 + $0x10] sm:$0xff]
        %v548 = vld [vmem:[%s544 + $0x18] sm:$0xff]
        %v549 = vld [vmem:[%s544 + $0x20] sm:$0xff]
        %v550 = vld [vmem:[%s544 + $0x28] sm:$0xff]
        %v551 = vld [vmem:[%s544 + $0x30] sm:$0xff]
        %v552 = vld [vmem:[%s544 + $0x38] sm:$0xff]
        %v553 = vld [vmem:[%s544 + $0x40] sm:$0xff]
        %v554 = vrot.slane %v455, 2
        %v555 = vrot.slane %v456, 2
        %v556 = vsel %vm281, %v554, %v555
        %v557 = vrot.slane %v457, 2
        %v558 = vsel %vm281, %v555, %v557
        %v559 = vsel %vm216, %v556, 0
        %v561 = vsel %vm216, %v558, 0
        %563 = vmatpush.msra.mxu0 0.0
        %564 = vmatpush.msra.mxu0 0.0
        %565 = vmatpush.msra.mxu0 0.0
        %566 = vmatpush.msra.mxu0 0.0
        %567 = vmatpush.msra.mxu0 0.0
        %568 = vmatpush.msra.mxu0 0.0
        %569 = vmatpush.msra.mxu0 0.0
        %570 = vmatpush.msra.mxu0 %v553
        %571 = vmatpush.msra.mxu0 %v552
        %572 = vmatpush.msra.mxu0 %v551
        %573 = vmatpush.msra.mxu0 %v550
        %574 = vmatpush.msra.mxu0 %v549
        %575 = vmatpush.msra.mxu0 %v548
        %576 = vmatpush.msra.mxu0 %v547
        %577 = vmatpush.msra.mxu0 %v546
        %578 = vmatpush.msra.mxu0 %v545
        %579 = vmatmul.f32.gmra.mxu0 %v559
        %v580 = vpop.f32.mrf.mxu0
        %v581 = vadd.f32 0.0, %v580
        %582 = vmatmul.f32.gmra.mxu0 %v561
        %v583 = vpop.f32.mrf.mxu0
        %v584 = vadd.f32 0.0, %v583
        %585 = vdwg.mxu0
        %v586 = vadd.f32 %v542, %v581
        %v587 = vadd.f32 %v543, %v584
        %v588 = vld [vmem:[%s2] sm:$0x1]
        %v590 = vperm.slane %v588, 0
        %v592 = vadd.f32 %v586, %v590
        %v593 = vadd.f32 %v587, %v590
        %vm594 = vcmp.ge.f32.partialorder %v592, 0.0
        %vm595 = vcmp.ge.f32.partialorder %v593, 0.0
        %v596 = vmul.f32 %v592, 0.01
        %v597 = vmul.f32 %v593, 0.01
        %v598 = vsel %vm594, %v592, %v596
        %v599 = vsel %vm595, %v593, %v597
        %600 = vst [vmem:[%s177] sm:$0xff] %v598
        %601 = vst [vmem:[%s177 + $0x8] sm:$0xff] %v599
        %s602 = sand.u32 %s107, 1
        %s603 = scalar_lea.sflag [#allocation3], %s602
        %s604 = sand.u32 %s107, 1
        %s605 = smul.addr %s604, 16
        %s606 = scalar_lea.vmem [#allocation2], %s605
        // Predicated region
        $region33: #{tpu_custom_call.1} parent=31 // pred_check
          %p607 = pneg %p117
        $region34: #{tpu_custom_call.1} parent=31 // pred_check_branch
          %609 = sbr.rel (%p607) target = $region36
        $region35: #{tpu_custom_call.1} parent=31 // pred_region
          %611 = vsyncadd %s603, 0
          %s612 = smul.addr %s22, 2
          %s613 = smul.addr %s21, 16
          %s614 = sadd.s32 %s612, %s613
          %s615 = smul.addr %s614, 8
          %s616 = scalar_lea.hbm %s3, %s615
          %s617 = sshll.u32 %s606, 4
          %s618 = int_to_ptr.vmem [resolvable:$true] %s617
          %s619 = sshll.u32 %s616, 4
          %s620 = int_to_ptr.hbm [resolvable:$true] %s619
          %625 = dma.vmem_to_hbm [thread:$0]  %s618, 256, %s620, %s603, 128, 128, 8
        $region36: #{tpu_custom_call.1} parent=31 // pred_fallthru
          _
      $region32: #{tpu_custom_call.1} parent=5 // pred_fallthru
        _
      %p626 = scmp.le.s32.totalorder 2, %s12
      // Predicated region
      $region37: #{tpu_custom_call.1} parent=5 // pred_check
        %p627 = pneg %p626
      $region38: #{tpu_custom_call.1} parent=5 // pred_check_branch
        %629 = sbr.rel (%p627) target = $region40
      $region39: #{tpu_custom_call.1} parent=5 // pred_region
        %s630 = ssub.s32 %s12, 2
        // Predicated region
        $region41: #{tpu_custom_call.1} parent=39 // pred_check
          %p631 = pneg %p123
        $region42: #{tpu_custom_call.1} parent=39 // pred_check_branch
          %633 = sbr.rel (%p631) target = $region44
        $region43: #{tpu_custom_call.1} parent=39 // pred_region
          %s634 = sand.u32 %s108, 1
          %s635 = scalar_lea.sflag [#allocation3], %s634
          %s636 = sand.u32 %s108, 1
          %s637 = smul.addr %s636, 16
          %s638 = scalar_lea.vmem [#allocation2], %s637
          %640 = dma.done %s635, 256
        $region44: #{tpu_custom_call.1} parent=39 // pred_fallthru
          _
      $region40: #{tpu_custom_call.1} parent=5 // pred_fallthru
        _
    $region6: #{tpu_custom_call.1} parent=1 // loop_footer
      %s16 = sadd.s32 1, %s12
    $region7: #{tpu_custom_call.1} parent=1 // loop_footer_branch
      %11 = sbr.rel target = $region3
    $region8: #{tpu_custom_call.1} parent=1 // loop_exit
      _
    %641 = vsyncpa [#allocation3], 1
    %s642 = scalar_lea.sflag [#allocation3], 1
    %643 = vsyncpa %s642, 1

</llo_original>
